<compile_context>
chip_gen: v7x
topology: tpu7x:2x2x1
jax: 0.10.0
libtpu: 0.0.40
codegen_flags: <defaults>
</compile_context>

<pallas_src>
import jax
import jax.numpy as jnp
from jax.experimental import pallas as pl
from jax.experimental.pallas import tpu as pltpu

EPS = 1e-5
NEG_SLOPE = 0.2


def _downsample_kernel(p_ref, w_ref, g_ref, b_ref, o_ref):
    # p_ref: (1, K_pad, OHW) bf16   w_ref: (Cout, K_pad) bf16
    # g_ref/b_ref: (Cout, 1) f32    o_ref: (1, Cout, OHW) f32
    p = p_ref[0]                                                     # (K_pad, OHW)
    y = jnp.dot(w_ref[...], p, preferred_element_type=jnp.float32)   # (Cout, OHW)  [MXU]

    # InstanceNorm2d: per-channel stats over spatial (lane axis), single pass, biased variance.
    inv_n = jnp.float32(1.0 / y.shape[-1])
    mean = jnp.sum(y, axis=-1, keepdims=True) * inv_n                # (Cout, 1)
    mean_sq = jnp.sum(y * y, axis=-1, keepdims=True) * inv_n         # (Cout, 1)
    var = mean_sq - mean * mean
    yn = (y - mean) * jax.lax.rsqrt(var + EPS)
    yn = yn * g_ref[...] + b_ref[...]

    # LeakyReLU(0.2): single VPU max (slope in (0,1)).
    o_ref[0] = jnp.maximum(yn, NEG_SLOPE * yn).astype(o_ref.dtype)


def downsampling_forward(x, weight, gamma, beta, *, stride=2, padding=1):
    """x: (N, Cin, H, W) float32. weight: (Cout, Cin, KH, KW). gamma/beta: (Cout,)."""
    N, Cin, H, W = x.shape
    Cout, _, KH, KW = weight.shape
    OH = (H + 2 * padding - KH) // stride + 1
    OW = (W + 2 * padding - KW) // stride + 1
    OHW = OH * OW
    K = Cin * KH * KW
    K_pad = ((K + 127) // 128) * 128

    # --- im2col (glue, plain JAX), directly in (N, K, OHW) layout, bf16 ---
    xp = jnp.pad(x.astype(jnp.bfloat16),
                 ((0, 0), (0, 0), (padding, padding), (padding, padding)))
    pats = jnp.stack(
        [xp[:, :, kh:kh + stride * OH:stride, kw:kw + stride * OW:stride]
         for kh in range(KH) for kw in range(KW)],
        axis=2,
    )                                               # (N, Cin, KH*KW, OH, OW)
    pats = pats.reshape(N, K, OHW)                  # (N, K, OHW); K ordered (cin, kh, kw)
    if K_pad != K:
        pats = jnp.pad(pats, ((0, 0), (0, K_pad - K), (0, 0)))

    w_mat = weight.reshape(Cout, K)                 # (Cout, K), same K ordering
    if K_pad != K:
        w_mat = jnp.pad(w_mat, ((0, 0), (0, K_pad - K)))
    w_mat = w_mat.astype(jnp.bfloat16)

    g2 = gamma.reshape(Cout, 1).astype(jnp.float32)
    b2 = beta.reshape(Cout, 1).astype(jnp.float32)

    # VMEM budget: double-buffered patch block + weight + output block (+ slack).
    need = (2 * K_pad * OHW * 2) + (2 * Cout * K_pad * 2) + (2 * Cout * OHW * 4) + (1 << 20)
    vmem_limit = int(min(max(need, 32 << 20), 48 << 20))

    out = pl.pallas_call(
        _downsample_kernel,
        out_shape=jax.ShapeDtypeStruct((N, Cout, OHW), jnp.float32),
        grid_spec=pltpu.PrefetchScalarGridSpec(
            num_scalar_prefetch=0,
            grid=(N,),
            in_specs=[
                pl.BlockSpec((1, K_pad, OHW), lambda n: (n, 0, 0)),
                pl.BlockSpec((Cout, K_pad), lambda n: (0, 0)),
                pl.BlockSpec((Cout, 1), lambda n: (0, 0)),
                pl.BlockSpec((Cout, 1), lambda n: (0, 0)),
            ],
            out_specs=pl.BlockSpec((1, Cout, OHW), lambda n: (n, 0, 0)),
        ),
        compiler_params=pltpu.CompilerParams(
            dimension_semantics=("parallel",),
            vmem_limit_bytes=vmem_limit,
        ),
    )(pats, w_mat, g2, b2)

    # (N, Cout, OHW) -> NCHW is a pure reshape (no transpose).
    return out.reshape(N, Cout, OH, OW)


def _reference(x, weight, gamma, beta, *, stride=2, padding=1):
    y = jax.lax.conv_general_dilated(
        x, weight, window_strides=(stride, stride),
        padding=[(padding, padding), (padding, padding)],
        dimension_numbers=("NCHW", "OIHW", "NCHW"),
    )
    mean = jnp.mean(y, axis=(2, 3), keepdims=True)
    var = jnp.mean((y - mean) ** 2, axis=(2, 3), keepdims=True)
    yn = (y - mean) * jax.lax.rsqrt(var + EPS)
    yn = yn * gamma.reshape(1, -1, 1, 1) + beta.reshape(1, -1, 1, 1)
    return jnp.where(yn >= 0, yn, NEG_SLOPE * yn)


if __name__ == "__main__":
    key = jax.random.PRNGKey(0)
    k_x, k_w, k_g, k_b = jax.random.split(key, 4)

    N, Cin, H, W = 2, 4, 16, 16
    Cout, KH, KW = 8, 4, 4

    x = jax.random.normal(k_x, (N, Cin, H, W), dtype=jnp.float32)
    # deterministic synthetic parameters (Conv2d has bias=False because norm=True)
    weight = jax.random.normal(k_w, (Cout, Cin, KH, KW), dtype=jnp.float32) * 0.1
    gamma = 1.0 + 0.1 * jax.random.normal(k_g, (Cout,), dtype=jnp.float32)
    beta = 0.1 * jax.random.normal(k_b, (Cout,), dtype=jnp.float32)

    out = downsampling_forward(x, weight, gamma, beta)
    out = jax.block_until_ready(out)

    ref = jax.block_until_ready(_reference(x, weight, gamma, beta))
    assert out.shape == (N, Cout, 8, 8), out.shape
    # Tolerance relaxed vs the f32 version because conv inputs are fed to the MXU in bf16.
    assert jnp.allclose(out, ref, atol=2e-2, rtol=2e-2), float(jnp.max(jnp.abs(out - ref)))

    print("KERNEL_OK")
</pallas_src>

<mosaic_0001>
module attributes {stable_mosaic.version = 11 : i64} {
  func.func @_downsample_kernel(%arg0: i32, %arg1: memref<1x128x64xbf16, #tpu.memory_space<vmem>>, %arg2: memref<8x128xbf16, #tpu.memory_space<vmem>>, %arg3: memref<8x1xf32, #tpu.memory_space<vmem>>, %arg4: memref<8x1xf32, #tpu.memory_space<vmem>>, %arg5: memref<1x8x64xf32, #tpu.memory_space<vmem>>) attributes {dimension_semantics = [#tpu.dimension_semantics<parallel>], iteration_bounds = array<i64: 2>, scalar_prefetch = 0 : i64, scratch_operands = 0 : i64, tpu.core_type = #tpu.core_type<tc>, window_params = [{transform_indices = @transform_0, window_bounds = array<i64: 1, 128, 64>}, {pipeline_mode = #tpu.pipeline_mode<synchronous>, transform_indices = @transform_1, window_bounds = array<i64: 8, 128>}, {pipeline_mode = #tpu.pipeline_mode<synchronous>, transform_indices = @transform_2, window_bounds = array<i64: 8, 1>}, {pipeline_mode = #tpu.pipeline_mode<synchronous>, transform_indices = @transform_3, window_bounds = array<i64: 8, 1>}, {transform_indices = @transform_4, window_bounds = array<i64: 1, 8, 64>}]} {
    %c0 = arith.constant 0 : index
    %c0_0 = arith.constant 0 : index
    %c0_1 = arith.constant 0 : index
    %0 = vector.load %arg1[%c0, %c0_0, %c0_1] : memref<1x128x64xbf16, #tpu.memory_space<vmem>>, vector<1x128x64xbf16>
    %1 = vector.shape_cast %0 : vector<1x128x64xbf16> to vector<128x64xbf16>
    %c0_2 = arith.constant 0 : index
    %c0_3 = arith.constant 0 : index
    %2 = vector.load %arg2[%c0_2, %c0_3] : memref<8x128xbf16, #tpu.memory_space<vmem>>, vector<8x128xbf16>
    %cst = arith.constant dense<0.000000e+00> : vector<8x64xf32>
    %3 = tpu.matmul %2, %1, %cst {dimension_numbers = #tpu.dot_dimension_numbers<[1], [0], [0], [1], [0, 0, 1, 1], [], []>} : vector<8x128xbf16>, vector<128x64xbf16>, vector<8x64xf32> -> vector<8x64xf32>
    %cst_4 = arith.constant dense<0.000000e+00> : vector<8xf32>
    %4 = vector.multi_reduction <add>, %3, %cst_4 [1] : vector<8x64xf32> to vector<8xf32>
    %5 = vector.shape_cast %4 : vector<8xf32> to vector<8x1xf32>
    %cst_5 = arith.constant 1.562500e-02 : f32
    %6 = vector.broadcast %cst_5 : f32 to vector<8x1xf32>
    %7 = arith.mulf %5, %6 : vector<8x1xf32>
    %8 = arith.mulf %3, %3 : vector<8x64xf32>
    %cst_6 = arith.constant dense<0.000000e+00> : vector<8xf32>
    %9 = vector.multi_reduction <add>, %8, %cst_6 [1] : vector<8x64xf32> to vector<8xf32>
    %10 = vector.shape_cast %9 : vector<8xf32> to vector<8x1xf32>
    %cst_7 = arith.constant 1.562500e-02 : f32
    %11 = vector.broadcast %cst_7 : f32 to vector<8x1xf32>
    %12 = arith.mulf %10, %11 : vector<8x1xf32>
    %13 = arith.mulf %7, %7 : vector<8x1xf32>
    %14 = arith.subf %12, %13 : vector<8x1xf32>
    %15 = vector.broadcast %7 : vector<8x1xf32> to vector<8x64xf32>
    %16 = arith.subf %3, %15 : vector<8x64xf32>
    %cst_8 = arith.constant 9.99999974E-6 : f32
    %17 = vector.broadcast %cst_8 : f32 to vector<8x1xf32>
    %18 = arith.addf %14, %17 : vector<8x1xf32>
    %19 = math.rsqrt %18 : vector<8x1xf32>
    %20 = vector.broadcast %19 : vector<8x1xf32> to vector<8x64xf32>
    %21 = arith.mulf %16, %20 : vector<8x64xf32>
    %c0_9 = arith.constant 0 : index
    %c0_10 = arith.constant 0 : index
    %22 = vector.load %arg3[%c0_9, %c0_10] : memref<8x1xf32, #tpu.memory_space<vmem>>, vector<8x1xf32>
    %23 = vector.broadcast %22 : vector<8x1xf32> to vector<8x64xf32>
    %24 = arith.mulf %21, %23 : vector<8x64xf32>
    %c0_11 = arith.constant 0 : index
    %c0_12 = arith.constant 0 : index
    %25 = vector.load %arg4[%c0_11, %c0_12] : memref<8x1xf32, #tpu.memory_space<vmem>>, vector<8x1xf32>
    %26 = vector.broadcast %25 : vector<8x1xf32> to vector<8x64xf32>
    %27 = arith.addf %24, %26 : vector<8x64xf32>
    %cst_13 = arith.constant 2.000000e-01 : f32
    %28 = vector.broadcast %cst_13 : f32 to vector<8x64xf32>
    %29 = arith.mulf %28, %27 : vector<8x64xf32>
    %30 = arith.maximumf %27, %29 : vector<8x64xf32>
    %c0_14 = arith.constant 0 : index
    %c0_15 = arith.constant 0 : index
    %c0_16 = arith.constant 0 : index
    %31 = vector.load %arg5[%c0_14, %c0_15, %c0_16] : memref<1x8x64xf32, #tpu.memory_space<vmem>>, vector<1x8x64xf32>
    %32 = vector.shape_cast %31 : vector<1x8x64xf32> to vector<8x64xf32>
    %33 = vector.shape_cast %30 : vector<8x64xf32> to vector<1x8x64xf32>
    tpu.vector_store %arg5[%c0_14, %c0_15, %c0_16], %33 {strides = array<i32>} : memref<1x8x64xf32, #tpu.memory_space<vmem>>, vector<1x8x64xf32>,
    return
  }
  func.func @transform_0(%arg0: i32) -> (i32, i32, i32) {
    %c0_i32 = arith.constant 0 : i32
    %c0_i32_0 = arith.constant 0 : i32
    %c0_i32_1 = arith.constant 0 : i32
    return %arg0, %c0_i32, %c0_i32_0 : i32, i32, i32
  }
  func.func @transform_1(%arg0: i32) -> (i32, i32) {
    %c0_i32 = arith.constant 0 : i32
    %c0_i32_0 = arith.constant 0 : i32
    %c0_i32_1 = arith.constant 0 : i32
    return %c0_i32, %c0_i32_0 : i32, i32
  }
  func.func @transform_2(%arg0: i32) -> (i32, i32) {
    %c0_i32 = arith.constant 0 : i32
    %c0_i32_0 = arith.constant 0 : i32
    %c0_i32_1 = arith.constant 0 : i32
    return %c0_i32, %c0_i32_0 : i32, i32
  }
  func.func @transform_3(%arg0: i32) -> (i32, i32) {
    %c0_i32 = arith.constant 0 : i32
    %c0_i32_0 = arith.constant 0 : i32
    %c0_i32_1 = arith.constant 0 : i32
    return %c0_i32, %c0_i32_0 : i32, i32
  }
  func.func @transform_4(%arg0: i32) -> (i32, i32, i32) {
    %c0_i32 = arith.constant 0 : i32
    %c0_i32_0 = arith.constant 0 : i32
    %c0_i32_1 = arith.constant 0 : i32
    return %arg0, %c0_i32, %c0_i32_0 : i32, i32, i32
  }
}

</mosaic_0001>

<llo_original>
// kernel: tpu_custom_call.1
$region0: #{tpu_custom_call.1}
  #allocation0 [shape = 'u32[]', space=smem, size = 0x4, offset = 0x4, fixed_abs, tag = 'smem constant byte address 0x4 - core index']
  #allocation1 [shape = 'u32[144,128]{1,0:T(1,128)}', space=vmem, size = 0x12000, scoped, tag = 'internal scratch']
  %s0 = inlined_call_operand.vmem [shape: bf16[2,128,64], index: 0, kind: input, shape index: {}]
  %s1 = inlined_call_operand.vmem [shape: bf16[8,128], index: 1, kind: input, shape index: {}]
  %s2 = inlined_call_operand.vmem [shape: f32[8,1], index: 2, kind: input, shape index: {}]
  %s3 = inlined_call_operand.vmem [shape: f32[8,1], index: 3, kind: input, shape index: {}]
  %s4 = inlined_call_operand.hbm [shape: f32[2,8,64], index: 4, kind: output, shape index: {}]
  %s5 = sld [smem:[#allocation0]]
  $region49: #{tpu_custom_call.1} parent=0
    _
  %s7 = ssub.s32 1, %s5
  %s8 = scalar_select 0, %s7, %s5
  $region1: #{tpu_custom_call.1} parent=0
    #allocation2 [shape = 'u8[8192]{0}', space=vmem, size = 0x2000, scoped, tag = 'output window, operand 0']
    #allocation3 [shape = 's32[2]{0}', space=sflag, size = 0x8, scoped, tag = 'scoped memory for tpu_custom_call.1']
    %9 = vsyncpa [#allocation3], 0
    %s10 = scalar_lea.sflag [#allocation3], 1
    %11 = vsyncpa %s10, 0
    loop: start=0, step=1, limit=4
    $region2: #{tpu_custom_call.1} parent=1 // loop_pre_header
      _
    $region3: #{tpu_custom_call.1} parent=1 // loop_header
      %s13 = sphi 0, %s17
      %p14 = scmp.ge.s32.totalorder %s13, 4
      %s23 = sphi 0, %s25
      %s26 = sphi 0, %s23
      %s27 = sphi 0, %s26
      %s43 = sphi 0, %s27
      %s47 = sphi 0, %s47
      %s49 = sphi 0, %s47
      %s50 = sphi 0, %s49
      %s64 = sphi 0, %s50
      %s68 = sphi 0, %s68
      %s70 = sphi 0, %s68
      %s71 = sphi 0, %s70
      %s85 = sphi 0, %s71
      %s89 = sphi 0, %s89
      %s91 = sphi 0, %s89
      %s92 = sphi 0, %s91
      %s106 = sphi 0, %s92
      %s112 = sphi 0, %s114
      %s115 = sphi 0, %s112
      %s116 = sphi 0, %s115
      %s132 = sphi 0, %s116
    $region4: #{tpu_custom_call.1} parent=1 // loop_header_branch
      %16 = sbr.rel (%p14) target = $region8
    $region5: #{tpu_custom_call.1} parent=1 // loop_body
      %s18 = ssub.s32 %s13, 1
      %s19 = ssub.s32 %s13, 2
      %s20 = sadd.s32 %s13, 1
      %s21 = ssub.s32 %s13, %s20
      %p22 = scmp.eq.s32.totalorder %s21, 0
      %s24 = sadd.s32 %s23, 1
      %s25 = scalar_select %p22, %s23, %s24
      %p28 = pneg %p22
      %p29 = scmp.eq.s32.totalorder %s13, 1
      %p30 = por %p28, %p29
      %p31 = scmp.ne.s32.totalorder %s23, %s26
      %p32 = scmp.eq.s32.totalorder %s13, 0
      %p33 = por %p31, %p32
      %p34 = scmp.ne.s32.totalorder %s23, %s26
      %p35 = scmp.eq.s32.totalorder %s18, 1
      %p36 = por %p34, %p35
      %p37 = scmp.ne.s32.totalorder %s26, %s27
      %p38 = scmp.eq.s32.totalorder %s18, 0
      %p39 = por %p37, %p38
      %p40 = scmp.ne.s32.totalorder %s26, %s27
      %p41 = scmp.eq.s32.totalorder %s19, 1
      %p42 = por %p40, %p41
      %p44 = scmp.ne.s32.totalorder %s27, %s43
      %p45 = scmp.eq.s32.totalorder %s19, 0
      %p46 = por %p44, %p45
      %s48 = sadd.s32 %s47, 1
      %p51 = scmp.eq.s32.totalorder %s13, 1
      %p52 = scmp.ne.s32.totalorder %s47, %s49
      %p53 = scmp.eq.s32.totalorder %s13, 0
      %p54 = por %p52, %p53
      %p55 = scmp.ne.s32.totalorder %s47, %s49
      %p56 = scmp.eq.s32.totalorder %s18, 1
      %p57 = por %p55, %p56
      %p58 = scmp.ne.s32.totalorder %s49, %s50
      %p59 = scmp.eq.s32.totalorder %s18, 0
      %p60 = por %p58, %p59
      %p61 = scmp.ne.s32.totalorder %s49, %s50
      %p62 = scmp.eq.s32.totalorder %s19, 1
      %p63 = por %p61, %p62
      %p65 = scmp.ne.s32.totalorder %s50, %s64
      %p66 = scmp.eq.s32.totalorder %s19, 0
      %p67 = por %p65, %p66
      %s69 = sadd.s32 %s68, 1
      %p72 = scmp.eq.s32.totalorder %s13, 1
      %p73 = scmp.ne.s32.totalorder %s68, %s70
      %p74 = scmp.eq.s32.totalorder %s13, 0
      %p75 = por %p73, %p74
      %p76 = scmp.ne.s32.totalorder %s68, %s70
      %p77 = scmp.eq.s32.totalorder %s18, 1
      %p78 = por %p76, %p77
      %p79 = scmp.ne.s32.totalorder %s70, %s71
      %p80 = scmp.eq.s32.totalorder %s18, 0
      %p81 = por %p79, %p80
      %p82 = scmp.ne.s32.totalorder %s70, %s71
      %p83 = scmp.eq.s32.totalorder %s19, 1
      %p84 = por %p82, %p83
      %p86 = scmp.ne.s32.totalorder %s71, %s85
      %p87 = scmp.eq.s32.totalorder %s19, 0
      %p88 = por %p86, %p87
      %s90 = sadd.s32 %s89, 1
      %p93 = scmp.eq.s32.totalorder %s13, 1
      %p94 = scmp.ne.s32.totalorder %s89, %s91
      %p95 = scmp.eq.s32.totalorder %s13, 0
      %p96 = por %p94, %p95
      %p97 = scmp.ne.s32.totalorder %s89, %s91
      %p98 = scmp.eq.s32.totalorder %s18, 1
      %p99 = por %p97, %p98
      %p100 = scmp.ne.s32.totalorder %s91, %s92
      %p101 = scmp.eq.s32.totalorder %s18, 0
      %p102 = por %p100, %p101
      %p103 = scmp.ne.s32.totalorder %s91, %s92
      %p104 = scmp.eq.s32.totalorder %s19, 1
      %p105 = por %p103, %p104
      %p107 = scmp.ne.s32.totalorder %s92, %s106
      %p108 = scmp.eq.s32.totalorder %s19, 0
      %p109 = por %p107, %p108
      %s110 = ssub.s32 %s13, %s20
      %p111 = scmp.eq.s32.totalorder %s110, 0
      %s113 = sadd.s32 %s112, 1
      %s114 = scalar_select %p111, %s112, %s113
      %p117 = pneg %p111
      %p118 = scmp.eq.s32.totalorder %s13, 1
      %p119 = por %p117, %p118
      %p120 = scmp.ne.s32.totalorder %s112, %s115
      %p121 = scmp.eq.s32.totalorder %s13, 0
      %p122 = por %p120, %p121
      %p123 = scmp.ne.s32.totalorder %s112, %s115
      %p124 = scmp.eq.s32.totalorder %s18, 1
      %p125 = por %p123, %p124
      %p126 = scmp.ne.s32.totalorder %s115, %s116
      %p127 = scmp.eq.s32.totalorder %s18, 0
      %p128 = por %p126, %p127
      %p129 = scmp.ne.s32.totalorder %s115, %s116
      %p130 = scmp.eq.s32.totalorder %s19, 1
      %p131 = por %p129, %p130
      %p133 = scmp.ne.s32.totalorder %s116, %s132
      %p134 = scmp.eq.s32.totalorder %s19, 0
      %p135 = por %p133, %p134
      %p136 = scmp.le.s32.totalorder 1, %s13
      %p137 = scmp.lt.s32.totalorder %s13, 3
      %p138 = pnand %p136, %p137
      %p139 = pneg %p138
      // Predicated region
      $region9: #{tpu_custom_call.1} parent=5 // pred_check
        _
      $region10: #{tpu_custom_call.1} parent=5 // pred_check_branch
        %141 = sbr.rel (%p138) target = $region12
      $region11: #{tpu_custom_call.1} parent=5 // pred_region
        %s142 = ssub.s32 %s13, 1
        // Predicated region
        $region13: #{tpu_custom_call.1} parent=11 // pred_check
          %p143 = pneg %p60
        $region14: #{tpu_custom_call.1} parent=11 // pred_check_branch
          %145 = sbr.rel (%p143) target = $region16
        $region15: #{tpu_custom_call.1} parent=11 // pred_region
          _
        $region16: #{tpu_custom_call.1} parent=11 // pred_fallthru
          _
        // Predicated region
        $region17: #{tpu_custom_call.1} parent=11 // pred_check
          %p146 = pneg %p81
        $region18: #{tpu_custom_call.1} parent=11 // pred_check_branch
          %148 = sbr.rel (%p146) target = $region20
        $region19: #{tpu_custom_call.1} parent=11 // pred_region
          _
        $region20: #{tpu_custom_call.1} parent=11 // pred_fallthru
          _
        // Predicated region
        $region21: #{tpu_custom_call.1} parent=11 // pred_check
          %p149 = pneg %p102
        $region22: #{tpu_custom_call.1} parent=11 // pred_check_branch
          %151 = sbr.rel (%p149) target = $region24
        $region23: #{tpu_custom_call.1} parent=11 // pred_region
          _
        $region24: #{tpu_custom_call.1} parent=11 // pred_fallthru
          _
      $region12: #{tpu_custom_call.1} parent=5 // pred_fallthru
        _
      %p152 = scmp.lt.s32.totalorder %s13, 2
      // Predicated region
      $region25: #{tpu_custom_call.1} parent=5 // pred_check
        %p153 = pneg %p152
      $region26: #{tpu_custom_call.1} parent=5 // pred_check_branch
        %155 = sbr.rel (%p153) target = $region28
      $region27: #{tpu_custom_call.1} parent=5 // pred_region
        // Predicated region
        $region29: #{tpu_custom_call.1} parent=27 // pred_check
          %p156 = pneg %p33
        $region30: #{tpu_custom_call.1} parent=27 // pred_check_branch
          %158 = sbr.rel (%p156) target = $region32
        $region31: #{tpu_custom_call.1} parent=27 // pred_region
          %p159 = scmp.lt.s32.totalorder %s13, 1
          %s160 = scalar_select %p159, %s13, 1
          %s161 = smul.addr %s160, 16
          %s162 = smul.addr %s161, 4
          %s163 = scalar_lea.vmem %s0, %s162
        $region32: #{tpu_custom_call.1} parent=27 // pred_fallthru
          _
      $region28: #{tpu_custom_call.1} parent=5 // pred_fallthru
        _
      %p164 = scmp.le.s32.totalorder 1, %s13
      %p165 = scmp.lt.s32.totalorder %s13, 3
      %p166 = pnand %p164, %p165
      %p167 = pneg %p166
      // Predicated region
      $region33: #{tpu_custom_call.1} parent=5 // pred_check
        _
      $region34: #{tpu_custom_call.1} parent=5 // pred_check_branch
        %169 = sbr.rel (%p166) target = $region36
      $region35: #{tpu_custom_call.1} parent=5 // pred_region
        %s170 = ssub.s32 %s13, 1
        %p171 = scmp.lt.s32.totalorder %s18, 1
        %s172 = scalar_select %p171, %s18, 1
        %s173 = smul.addr %s172, 16
        %s174 = smul.addr %s173, 4
        %s175 = scalar_lea.vmem %s0, %s174
        %p176 = pneg %p39
        %p177 = pneg %p36
        %p178 = pneg %p60
        %p179 = pneg %p57
        %p180 = pneg %p81
        %p181 = pneg %p78
        %p182 = pneg %p102
        %p183 = pneg %p99
        %p184 = pneg %p128
        %p185 = pneg %p125
        %s186 = sand.u32 %s115, 1
        %s187 = scalar_lea.sflag [#allocation3], %s186
        %s188 = sand.u32 %s115, 1
        %s189 = smul.addr %s188, 8
        %s190 = scalar_lea.vmem [#allocation2], %s189
        %p191 = scmp.lt.s32.totalorder %s18, 1
        %s192 = scalar_select %p191, %s18, 1
        %s193 = smul.addr %s192, 16
        %s194 = smul.addr %s193, 4
        %s195 = scalar_lea.vmem %s0, %s194
        %v197 = vld [vmem:[%s195] sm:$0xf]
        %v198 = vld [vmem:[%s195 + $0x4] sm:$0xf]
        %v199 = vld [vmem:[%s195 + $0x8] sm:$0xf]
        %v200 = vld [vmem:[%s195 + $0xc] sm:$0xf]
        %v201 = vld [vmem:[%s195 + $0x10] sm:$0xf]
        %v202 = vld [vmem:[%s195 + $0x14] sm:$0xf]
        %v203 = vld [vmem:[%s195 + $0x18] sm:$0xf]
        %v204 = vld [vmem:[%s195 + $0x1c] sm:$0xf]
        %v205 = vld [vmem:[%s195 + $0x20] sm:$0xf]
        %v206 = vld [vmem:[%s195 + $0x24] sm:$0xf]
        %v207 = vld [vmem:[%s195 + $0x28] sm:$0xf]
        %v208 = vld [vmem:[%s195 + $0x2c] sm:$0xf]
        %v209 = vld [vmem:[%s195 + $0x30] sm:$0xf]
        %v210 = vld [vmem:[%s195 + $0x34] sm:$0xf]
        %v211 = vld [vmem:[%s195 + $0x38] sm:$0xf]
        %v212 = vld [vmem:[%s195 + $0x3c] sm:$0xf]
        %v213 = vld [vmem:[%s1] sm:$0xf]
        %v230 = vunpack.c.l.b16 %v197
        %v231 = vunpack.c.l.b16 %v198
        %v232 = vunpack.c.l.b16 %v199
        %v233 = vunpack.c.l.b16 %v200
        %v234 = vunpack.c.l.b16 %v201
        %v235 = vunpack.c.l.b16 %v202
        %v236 = vunpack.c.l.b16 %v203
        %v237 = vunpack.c.l.b16 %v204
        %v238 = vunpack.c.l.b16 %v205
        %v239 = vunpack.c.l.b16 %v206
        %v240 = vunpack.c.l.b16 %v207
        %v241 = vunpack.c.l.b16 %v208
        %v242 = vunpack.c.l.b16 %v209
        %v243 = vunpack.c.l.b16 %v210
        %v244 = vunpack.c.l.b16 %v211
        %v245 = vunpack.c.l.b16 %v212
        %v246 = vpack.c.b16 %v231, %v230
        %v247 = vpack.c.b16 %v233, %v232
        %v248 = vpack.c.b16 %v235, %v234
        %v249 = vpack.c.b16 %v237, %v236
        %v250 = vpack.c.b16 %v239, %v238
        %v251 = vpack.c.b16 %v241, %v240
        %v252 = vpack.c.b16 %v243, %v242
        %v253 = vpack.c.b16 %v245, %v244
        %262 = vmatprep.subr.bf16.mxu0 0
        %263 = vmatpush1.bf16.msra.mxu0 %v246
        %264 = vmatprep.subr.bf16.mxu0 0
        %265 = vmatpush1.bf16.msra.mxu0 %v247
        %266 = vmatprep.subr.bf16.mxu0 0
        %267 = vmatpush1.bf16.msra.mxu0 %v248
        %268 = vmatprep.subr.bf16.mxu0 0
        %269 = vmatpush1.bf16.msra.mxu0 %v249
        %270 = vmatprep.subr.bf16.mxu0 0
        %271 = vmatpush1.bf16.msra.mxu0 %v250
        %272 = vmatprep.subr.bf16.mxu0 0
        %273 = vmatpush1.bf16.msra.mxu0 %v251
        %274 = vmatprep.subr.bf16.mxu0 0
        %275 = vmatpush1.bf16.msra.mxu0 %v252
        %276 = vmatprep.subr.bf16.mxu0 0
        %277 = vmatpush1.bf16.msra.mxu0 %v253
        %278 = vmatprep.subr.bf16.mxu0 0
        %279 = vmatpush1.bf16.msra.mxu0 0
        %280 = vmatprep.subr.bf16.mxu0 0
        %281 = vmatpush1.bf16.msra.mxu0 0
        %282 = vmatprep.subr.bf16.mxu0 0
        %283 = vmatpush1.bf16.msra.mxu0 0
        %284 = vmatprep.subr.bf16.mxu0 0
        %285 = vmatpush1.bf16.msra.mxu0 0
        %286 = vmatprep.subr.bf16.mxu0 0
        %287 = vmatpush1.bf16.msra.mxu0 0
        %288 = vmatprep.subr.bf16.mxu0 0
        %289 = vmatpush1.bf16.msra.mxu0 0
        %290 = vmatprep.subr.bf16.mxu0 0
        %291 = vmatpush1.bf16.msra.mxu0 0
        %292 = vmatprep.subr.bf16.mxu0 0
        %293 = vmatpush1.bf16.msra.mxu0 0
        %294 = vmatprep.mubr.bf16.mxu0 0
        %295 = vmatmul.mubr.bf16.gmra.mrb[0].mxu0 %v213
        %v296 = vpop.f32.mrb[0].mxu0
        %v297 = vadd.f32 0.0, %v296
        %v298 = vpop.f32.mrb[0].mxu0
        %v299 = vpop.f32.mrb[0].mxu0
        %v300 = vpop.f32.mrb[0].mxu0
        %301 = vdwg.mxu0
        %vm302 = vcmask 523264
        %v303 = vsel %vm302, %v297, 0.0
        %304 = vadd.xlane.f32.xlu0 %v303
        %v305 = vpop.xlane.xlu0 %304
        %v306 = vmul.f32 %v305, 0.015625
        %v307 = vmul.f32 %v297, %v297
        %v308 = vsel %vm302, %v307, 0.0
        %309 = vadd.xlane.f32.xlu0 %v308
        %v310 = vpop.xlane.xlu0 %309
        %v311 = vmul.f32 %v310, 0.015625
        %v312 = vmul.f32 %v306, %v306
        %v313 = vsub.f32 %v311, %v312
        %v314 = vsub.f32 %v297, %v306
        %v315 = vadd.f32 %v313, 1e-05
        %v316 = vrsqrt.pop %v315
        %v317 = vmul.f32 %v314, %v316
        %v318 = vld [vmem:[%s2] sm:$0xff]
        %320 = vset.pattern.permute.xlu0 0
        %321 = vperm.xlu0 %320, %v318
        %v322 = vpop.permute.xlu0 %321
        %v324 = vmul.f32 %v317, %v322
        %v325 = vld [vmem:[%s3] sm:$0xff]
        %327 = vset.pattern.permute.xlu0 0
        %328 = vperm.xlu0 %327, %v325
        %v329 = vpop.permute.xlu0 %328
        %v331 = vadd.f32 %v324, %v329
        %v332 = vmul.f32 %v331, 0.2
        %v333 = vmax.f32 %v331, %v332
        %334 = vst.msk [vmem:[%s190] sm:$0xff] %vm302, %v333
        %s335 = sand.u32 %s115, 1
        %s336 = scalar_lea.sflag [#allocation3], %s335
        %s337 = sand.u32 %s115, 1
        %s338 = smul.addr %s337, 8
        %s339 = scalar_lea.vmem [#allocation2], %s338
        // Predicated region
        $region37: #{tpu_custom_call.1} parent=35 // pred_check
          %p340 = pneg %p125
        $region38: #{tpu_custom_call.1} parent=35 // pred_check_branch
          %342 = sbr.rel (%p340) target = $region40
        $region39: #{tpu_custom_call.1} parent=35 // pred_region
          %s344 = ssub.s32 128, 128
          %345 = vsyncadd %s336, %s344
          %s346 = smul.addr %s18, 128
          %s347 = scalar_lea.hbm %s4, %s346
          %s349 = sshll.u32 %s339, 4
          %s350 = int_to_ptr.vmem [resolvable:$true] %s349
          %352 = dma.vmem_to_hbm [thread:$0]  %s350, 128, %s347, %s336
        $region40: #{tpu_custom_call.1} parent=35 // pred_fallthru
          _
      $region36: #{tpu_custom_call.1} parent=5 // pred_fallthru
        _
      %p353 = scmp.le.s32.totalorder 2, %s13
      // Predicated region
      $region41: #{tpu_custom_call.1} parent=5 // pred_check
        %p354 = pneg %p353
      $region42: #{tpu_custom_call.1} parent=5 // pred_check_branch
        %356 = sbr.rel (%p354) target = $region44
      $region43: #{tpu_custom_call.1} parent=5 // pred_region
        %s357 = ssub.s32 %s13, 2
        // Predicated region
        $region45: #{tpu_custom_call.1} parent=43 // pred_check
          %p358 = pneg %p131
        $region46: #{tpu_custom_call.1} parent=43 // pred_check_branch
          %360 = sbr.rel (%p358) target = $region48
        $region47: #{tpu_custom_call.1} parent=43 // pred_region
          %s361 = sand.u32 %s116, 1
          %s362 = scalar_lea.sflag [#allocation3], %s361
          %s363 = sand.u32 %s116, 1
          %s364 = smul.addr %s363, 8
          %s365 = scalar_lea.vmem [#allocation2], %s364
          %366 = dma.done %s362, 128
        $region48: #{tpu_custom_call.1} parent=43 // pred_fallthru
          _
      $region44: #{tpu_custom_call.1} parent=5 // pred_fallthru
        _
    $region6: #{tpu_custom_call.1} parent=1 // loop_footer
      %s17 = sadd.s32 1, %s13
    $region7: #{tpu_custom_call.1} parent=1 // loop_footer_branch
      %12 = sbr.rel target = $region3
    $region8: #{tpu_custom_call.1} parent=1 // loop_exit
      _
    %367 = vsyncpa [#allocation3], 1
    %s368 = scalar_lea.sflag [#allocation3], 1
    %369 = vsyncpa %s368, 1

</llo_original>
